<compile_context>
chip_gen: v5e
topology: v5e:2x2
jax: 0.10.0
libtpu: 0.0.40
codegen_flags: <defaults>
</compile_context>

<pallas_src>
import functools

import jax
import jax.numpy as jnp
from jax import lax
from jax.experimental import pallas as pl
from jax.experimental.pallas import tpu as pltpu

HIDDEN = 128
HEAD_PAD = 128          # lane-dense padded width of the fused (adv | val) head output
_MIN_TC_SPLIT = 1024    # only split the grid for dual-TC sharding above this many rows


def _cdiv(a, b):
    return -(-a // b)


def _round_up(x, m):
    return _cdiv(x, m) * m


def _has_bf16_valu():
    """v6e/v7x have a bf16 VALU (bf16 epilogue OK); v5e and older do not."""
    try:
        kind = jax.devices()[0].device_kind.lower()
    except Exception:
        return False
    return ("v6" in kind) or ("v7" in kind)


def _choose_tile(batch, tile_b):
    """Largest batch tile <= tile_b (multiple of 8). For large batches keep the
    'parallel' grid even and >= 2 steps so v7x's second TensorCore is used."""
    tb = _round_up(min(tile_b, _round_up(batch, 8)), 8)
    n_b = _cdiv(batch, tb)
    if batch >= _MIN_TC_SPLIT and n_b % 2 == 1:
        tb = _round_up(_cdiv(batch, n_b + 1), 8)
    return tb


def dueling_dqn_kernel(x_ref, w1_ref, b1_ref, w2_ref, b2_ref, w3_ref, b3_ref,
                       wh_ref, bh_ref, q_ref, *, action_dim, bf16_epilogue):
    """One batch tile: 3x (Linear+ReLU) + fused dueling head + dueling combine."""
    f32 = jnp.float32
    cdt = jnp.bfloat16  # MXU operand dtype

    def hidden_layer(h, w_ref, b_ref):
        acc = jnp.dot(h, w_ref[...], preferred_element_type=f32)
        if bf16_epilogue:
            # v6e/v7x: bf16 VALU -> halves VPU work / spill traffic on (TB,128) tiles.
            return jnp.maximum(acc.astype(cdt) + b_ref[...].astype(cdt), 0)
        # v5e: no bf16 VALU; keep the epilogue in f32, cast only for the next MXU op.
        return jnp.maximum(acc + b_ref[...], 0.0).astype(cdt)

    h = x_ref[...].astype(cdt)                     # f32 HBM tile -> bf16 once, in-kernel
    h = hidden_layer(h, w1_ref, b1_ref)
    h = hidden_layer(h, w2_ref, b2_ref)
    h = hidden_layer(h, w3_ref, b3_ref)

    # Fused head: cols [0, A) = advantage, col A = value, cols > A are exactly 0.
    head = jnp.dot(h, wh_ref[...], preferred_element_type=f32) + bh_ref[...]   # (TB,128) f32

    col = lax.broadcasted_iota(jnp.int32, head.shape, 1)
    adv_sum = jnp.sum(jnp.where(col < action_dim, head, 0.0), axis=1, keepdims=True)
    val = jnp.sum(jnp.where(col == action_dim, head, 0.0), axis=1, keepdims=True)
    adv_mean = adv_sum * (1.0 / action_dim)        # multiply, not divide

    # q = adv + (val - mean(adv)); the (TB,1) correction is merged before the single
    # broadcast-add. Padding columns hold garbage and are sliced off by the caller.
    q_ref[...] = (head + (val - adv_mean)).astype(q_ref.dtype)


def pack_params(params):
    """One-time prep (hoisted out of the per-call path): pack the value/advantage
    heads into one lane-dense (128,128) weight/bias and cast weights to bf16."""
    action_dim = params["wa"].shape[1]
    assert action_dim + 1 <= HEAD_PAD, (
        f"action_dim={action_dim} must satisfy action_dim + 1 <= {HEAD_PAD}")
    bf16 = jnp.bfloat16

    wh = jnp.zeros((HIDDEN, HEAD_PAD), jnp.float32)
    wh = wh.at[:, :action_dim].set(params["wa"])
    wh = wh.at[:, action_dim:action_dim + 1].set(params["wv"])
    bh = jnp.zeros((1, HEAD_PAD), jnp.float32)
    bh = bh.at[:, :action_dim].set(params["ba"])
    bh = bh.at[:, action_dim:action_dim + 1].set(params["bv"])

    return {
        "w1": params["w1"].astype(bf16), "b1": params["b1"],
        "w2": params["w2"].astype(bf16), "b2": params["b2"],
        "w3": params["w3"].astype(bf16), "b3": params["b3"],
        "wh": wh.astype(bf16), "bh": bh,
        "action_dim": action_dim,
    }


def dueling_dqn_forward(x, packed, *, tile_b=2048, out_dtype=jnp.bfloat16,
                        bf16_epilogue=None):
    """x: (batch, input_dim) f32.  packed: dict from pack_params()."""
    batch, input_dim = x.shape
    action_dim = packed["action_dim"]
    if bf16_epilogue is None:
        bf16_epilogue = _has_bf16_valu()

    tb = _choose_tile(batch, tile_b)
    n_b = _cdiv(batch, tb)

    flops = 2 * n_b * tb * (input_dim * HIDDEN + 2 * HIDDEN * HIDDEN + HIDDEN * HEAD_PAD)
    bytes_accessed = int(
        batch * input_dim * 4                                        # f32 input
        + batch * HEAD_PAD * jnp.dtype(out_dtype).itemsize           # output slab
        + (packed["w1"].size + packed["w2"].size
           + packed["w3"].size + packed["wh"].size) * 2              # resident bf16 weights
        + (3 * HIDDEN + HEAD_PAD) * 4)                               # f32 biases

    const = lambda i: (0, 0)
    kernel = functools.partial(dueling_dqn_kernel, action_dim=action_dim,
                               bf16_epilogue=bf16_epilogue)

    q_pad = pl.pallas_call(
        kernel,
        out_shape=jax.ShapeDtypeStruct((batch, HEAD_PAD), out_dtype),
        grid_spec=pltpu.PrefetchScalarGridSpec(
            num_scalar_prefetch=0,
            grid=(n_b,),
            in_specs=[
                pl.BlockSpec((tb, input_dim), lambda i: (i, 0)),   # x streamed (ragged last tile OK)
                pl.BlockSpec((input_dim, HIDDEN), const),          # w1 (VMEM-resident)
                pl.BlockSpec((1, HIDDEN), const),                  # b1
                pl.BlockSpec((HIDDEN, HIDDEN), const),             # w2
                pl.BlockSpec((1, HIDDEN), const),                  # b2
                pl.BlockSpec((HIDDEN, HIDDEN), const),             # w3
                pl.BlockSpec((1, HIDDEN), const),                  # b3
                pl.BlockSpec((HIDDEN, HEAD_PAD), const),           # fused head weight
                pl.BlockSpec((1, HEAD_PAD), const),                # fused head bias
            ],
            out_specs=pl.BlockSpec((tb, HEAD_PAD), lambda i: (i, 0)),
        ),
        compiler_params=pltpu.CompilerParams(
            dimension_semantics=("parallel",),
            vmem_limit_bytes=48 * 1024 * 1024),
        cost_estimate=pl.CostEstimate(flops=flops, transcendentals=0,
                                      bytes_accessed=bytes_accessed),
    )(x, packed["w1"], packed["b1"], packed["w2"], packed["b2"],
      packed["w3"], packed["b3"], packed["wh"], packed["bh"])

    return q_pad[:, :action_dim]


def init_params(key, input_dim, action_dim, hidden=HIDDEN):
    """Deterministic synthetic init matching nn.Linear shapes (stored transposed,
    [in, out]); biases kept 2D (1, out) for TPU-friendly broadcasting."""
    ks = jax.random.split(key, 10)

    def linear(kw, kb, fan_in, fan_out):
        bound = 1.0 / jnp.sqrt(jnp.float32(fan_in))
        w = jax.random.uniform(kw, (fan_in, fan_out), jnp.float32, -bound, bound)
        b = jax.random.uniform(kb, (1, fan_out), jnp.float32, -bound, bound)
        return w, b

    w1, b1 = linear(ks[0], ks[1], input_dim, hidden)
    w2, b2 = linear(ks[2], ks[3], hidden, hidden)
    w3, b3 = linear(ks[4], ks[5], hidden, hidden)
    wv, bv = linear(ks[6], ks[7], hidden, 1)
    wa, ba = linear(ks[8], ks[9], hidden, action_dim)
    return {"w1": w1, "b1": b1, "w2": w2, "b2": b2, "w3": w3, "b3": b3,
            "wv": wv, "bv": bv, "wa": wa, "ba": ba}


def reference_forward(x, p, *, bf16_epilogue=False):
    """Plain-JAX reference mirroring the kernel's dtype recipe
    (bf16 MXU operands, f32 accumulate, matching epilogue precision)."""
    bf16 = jnp.bfloat16

    def hidden_layer(h, w, b):
        acc = jnp.dot(h, w.astype(bf16), preferred_element_type=jnp.float32)
        if bf16_epilogue:
            return jnp.maximum(acc.astype(bf16) + b.astype(bf16), 0)
        return jnp.maximum(acc + b, 0.0).astype(bf16)

    h = x.astype(bf16)
    h = hidden_layer(h, p["w1"], p["b1"])
    h = hidden_layer(h, p["w2"], p["b2"])
    h = hidden_layer(h, p["w3"], p["b3"])
    val = jnp.dot(h, p["wv"].astype(bf16), preferred_element_type=jnp.float32) + p["bv"]
    adv = jnp.dot(h, p["wa"].astype(bf16), preferred_element_type=jnp.float32) + p["ba"]
    return val + adv - adv.mean(axis=1, keepdims=True)


if __name__ == "__main__":
    input_dim = 16
    action_dim = 4

    key = jax.random.PRNGKey(0)
    k_x, k_p = jax.random.split(key)
    params = init_params(k_p, input_dim, action_dim)

    packed = pack_params(params)          # one-time packing / bf16 casts (hoisted)
    bf16_epi = _has_bf16_valu()

    ok = True
    # (batch, tile_b): aligned single tile, ragged sublane tile, multi-tile ragged grid.
    for batch, tile_b in ((8, 2048), (5, 2048), (197, 64)):
        xb = jax.random.normal(jax.random.fold_in(k_x, batch),
                               (batch, input_dim), dtype=jnp.float32)
        q = dueling_dqn_forward(xb, packed, tile_b=tile_b, bf16_epilogue=bf16_epi)
        jax.block_until_ready(q)

        q_ref = reference_forward(xb, params, bf16_epilogue=bf16_epi)
        ok &= q.shape == (batch, action_dim)
        # bf16 output slab -> compare at bf16-appropriate tolerance.
        ok &= bool(jnp.allclose(q.astype(jnp.float32), q_ref, atol=2e-2, rtol=2e-2))

    assert ok
    print("KERNEL_OK")
</pallas_src>

<mosaic_0001>
module attributes {stable_mosaic.version = 11 : i64} {
  func.func @dueling_dqn_kernel(%arg0: i32, %arg1: memref<8x16xf32, #tpu.memory_space<vmem>>, %arg2: memref<16x128xbf16, #tpu.memory_space<vmem>>, %arg3: memref<1x128xf32, #tpu.memory_space<vmem>>, %arg4: memref<128x128xbf16, #tpu.memory_space<vmem>>, %arg5: memref<1x128xf32, #tpu.memory_space<vmem>>, %arg6: memref<128x128xbf16, #tpu.memory_space<vmem>>, %arg7: memref<1x128xf32, #tpu.memory_space<vmem>>, %arg8: memref<128x128xbf16, #tpu.memory_space<vmem>>, %arg9: memref<1x128xf32, #tpu.memory_space<vmem>>, %arg10: memref<8x128xbf16, #tpu.memory_space<vmem>>) attributes {dimension_semantics = [#tpu.dimension_semantics<parallel>], iteration_bounds = array<i64: 1>, scalar_prefetch = 0 : i64, scratch_operands = 0 : i64, tpu.core_type = #tpu.core_type<tc>, window_params = [{transform_indices = @transform_0, window_bounds = array<i64: 8, 16>}, {pipeline_mode = #tpu.pipeline_mode<synchronous>, transform_indices = @transform_1, window_bounds = array<i64: 16, 128>}, {pipeline_mode = #tpu.pipeline_mode<synchronous>, transform_indices = @transform_2, window_bounds = array<i64: 1, 128>}, {pipeline_mode = #tpu.pipeline_mode<synchronous>, transform_indices = @transform_3, window_bounds = array<i64: 128, 128>}, {pipeline_mode = #tpu.pipeline_mode<synchronous>, transform_indices = @transform_4, window_bounds = array<i64: 1, 128>}, {pipeline_mode = #tpu.pipeline_mode<synchronous>, transform_indices = @transform_5, window_bounds = array<i64: 128, 128>}, {pipeline_mode = #tpu.pipeline_mode<synchronous>, transform_indices = @transform_6, window_bounds = array<i64: 1, 128>}, {pipeline_mode = #tpu.pipeline_mode<synchronous>, transform_indices = @transform_7, window_bounds = array<i64: 128, 128>}, {pipeline_mode = #tpu.pipeline_mode<synchronous>, transform_indices = @transform_8, window_bounds = array<i64: 1, 128>}, {transform_indices = @transform_9, window_bounds = array<i64: 8, 128>}]} {
    %c0 = arith.constant 0 : index
    %c0_0 = arith.constant 0 : index
    %0 = vector.load %arg1[%c0, %c0_0] : memref<8x16xf32, #tpu.memory_space<vmem>>, vector<8x16xf32>
    %1 = arith.truncf %0 : vector<8x16xf32> to vector<8x16xbf16>
    %c0_1 = arith.constant 0 : index
    %c0_2 = arith.constant 0 : index
    %2 = vector.load %arg2[%c0_1, %c0_2] : memref<16x128xbf16, #tpu.memory_space<vmem>>, vector<16x128xbf16>
    %cst = arith.constant dense<0.000000e+00> : vector<8x128xf32>
    %3 = tpu.matmul %1, %2, %cst {dimension_numbers = #tpu.dot_dimension_numbers<[1], [0], [0], [1], [0, 0, 1, 1], [], []>} : vector<8x16xbf16>, vector<16x128xbf16>, vector<8x128xf32> -> vector<8x128xf32>
    %c0_3 = arith.constant 0 : index
    %c0_4 = arith.constant 0 : index
    %4 = vector.load %arg3[%c0_3, %c0_4] : memref<1x128xf32, #tpu.memory_space<vmem>>, vector<1x128xf32>
    %5 = vector.broadcast %4 : vector<1x128xf32> to vector<8x128xf32>
    %6 = arith.addf %3, %5 : vector<8x128xf32>
    %cst_5 = arith.constant 0.000000e+00 : f32
    %7 = vector.broadcast %cst_5 : f32 to vector<8x128xf32>
    %8 = arith.maximumf %6, %7 : vector<8x128xf32>
    %9 = arith.truncf %8 : vector<8x128xf32> to vector<8x128xbf16>
    %c0_6 = arith.constant 0 : index
    %c0_7 = arith.constant 0 : index
    %10 = vector.load %arg4[%c0_6, %c0_7] : memref<128x128xbf16, #tpu.memory_space<vmem>>, vector<128x128xbf16>
    %cst_8 = arith.constant dense<0.000000e+00> : vector<8x128xf32>
    %11 = tpu.matmul %9, %10, %cst_8 {dimension_numbers = #tpu.dot_dimension_numbers<[1], [0], [0], [1], [0, 0, 1, 1], [], []>} : vector<8x128xbf16>, vector<128x128xbf16>, vector<8x128xf32> -> vector<8x128xf32>
    %c0_9 = arith.constant 0 : index
    %c0_10 = arith.constant 0 : index
    %12 = vector.load %arg5[%c0_9, %c0_10] : memref<1x128xf32, #tpu.memory_space<vmem>>, vector<1x128xf32>
    %13 = vector.broadcast %12 : vector<1x128xf32> to vector<8x128xf32>
    %14 = arith.addf %11, %13 : vector<8x128xf32>
    %cst_11 = arith.constant 0.000000e+00 : f32
    %15 = vector.broadcast %cst_11 : f32 to vector<8x128xf32>
    %16 = arith.maximumf %14, %15 : vector<8x128xf32>
    %17 = arith.truncf %16 : vector<8x128xf32> to vector<8x128xbf16>
    %c0_12 = arith.constant 0 : index
    %c0_13 = arith.constant 0 : index
    %18 = vector.load %arg6[%c0_12, %c0_13] : memref<128x128xbf16, #tpu.memory_space<vmem>>, vector<128x128xbf16>
    %cst_14 = arith.constant dense<0.000000e+00> : vector<8x128xf32>
    %19 = tpu.matmul %17, %18, %cst_14 {dimension_numbers = #tpu.dot_dimension_numbers<[1], [0], [0], [1], [0, 0, 1, 1], [], []>} : vector<8x128xbf16>, vector<128x128xbf16>, vector<8x128xf32> -> vector<8x128xf32>
    %c0_15 = arith.constant 0 : index
    %c0_16 = arith.constant 0 : index
    %20 = vector.load %arg7[%c0_15, %c0_16] : memref<1x128xf32, #tpu.memory_space<vmem>>, vector<1x128xf32>
    %21 = vector.broadcast %20 : vector<1x128xf32> to vector<8x128xf32>
    %22 = arith.addf %19, %21 : vector<8x128xf32>
    %cst_17 = arith.constant 0.000000e+00 : f32
    %23 = vector.broadcast %cst_17 : f32 to vector<8x128xf32>
    %24 = arith.maximumf %22, %23 : vector<8x128xf32>
    %25 = arith.truncf %24 : vector<8x128xf32> to vector<8x128xbf16>
    %c0_18 = arith.constant 0 : index
    %c0_19 = arith.constant 0 : index
    %26 = vector.load %arg8[%c0_18, %c0_19] : memref<128x128xbf16, #tpu.memory_space<vmem>>, vector<128x128xbf16>
    %cst_20 = arith.constant dense<0.000000e+00> : vector<8x128xf32>
    %27 = tpu.matmul %25, %26, %cst_20 {dimension_numbers = #tpu.dot_dimension_numbers<[1], [0], [0], [1], [0, 0, 1, 1], [], []>} : vector<8x128xbf16>, vector<128x128xbf16>, vector<8x128xf32> -> vector<8x128xf32>
    %c0_21 = arith.constant 0 : index
    %c0_22 = arith.constant 0 : index
    %28 = vector.load %arg9[%c0_21, %c0_22] : memref<1x128xf32, #tpu.memory_space<vmem>>, vector<1x128xf32>
    %29 = vector.broadcast %28 : vector<1x128xf32> to vector<8x128xf32>
    %30 = arith.addf %27, %29 : vector<8x128xf32>
    %31 = tpu.iota {dimensions = array<i32: 1>} : vector<8x128xi32>
    %c4_i32 = arith.constant 4 : i32
    %32 = vector.broadcast %c4_i32 : i32 to vector<8x128xi32>
    %33 = arith.cmpi slt, %31, %32 : vector<8x128xi32>
    %cst_23 = arith.constant 0.000000e+00 : f32
    %34 = vector.broadcast %cst_23 : f32 to vector<8x128xf32>
    %35 = arith.select %33, %30, %34 : vector<8x128xi1>, vector<8x128xf32>
    %cst_24 = arith.constant dense<0.000000e+00> : vector<8xf32>
    %36 = vector.multi_reduction <add>, %35, %cst_24 [1] : vector<8x128xf32> to vector<8xf32>
    %37 = vector.shape_cast %36 : vector<8xf32> to vector<8x1xf32>
    %c4_i32_25 = arith.constant 4 : i32
    %38 = vector.broadcast %c4_i32_25 : i32 to vector<8x128xi32>
    %39 = arith.cmpi eq, %31, %38 : vector<8x128xi32>
    %cst_26 = arith.constant 0.000000e+00 : f32
    %40 = vector.broadcast %cst_26 : f32 to vector<8x128xf32>
    %41 = arith.select %39, %30, %40 : vector<8x128xi1>, vector<8x128xf32>
    %cst_27 = arith.constant dense<0.000000e+00> : vector<8xf32>
    %42 = vector.multi_reduction <add>, %41, %cst_27 [1] : vector<8x128xf32> to vector<8xf32>
    %43 = vector.shape_cast %42 : vector<8xf32> to vector<8x1xf32>
    %cst_28 = arith.constant 2.500000e-01 : f32
    %44 = vector.broadcast %cst_28 : f32 to vector<8x1xf32>
    %45 = arith.mulf %37, %44 : vector<8x1xf32>
    %46 = arith.subf %43, %45 : vector<8x1xf32>
    %47 = vector.broadcast %46 : vector<8x1xf32> to vector<8x128xf32>
    %48 = arith.addf %30, %47 : vector<8x128xf32>
    %49 = arith.truncf %48 : vector<8x128xf32> to vector<8x128xbf16>
    %c0_29 = arith.constant 0 : index
    %c0_30 = arith.constant 0 : index
    %50 = vector.load %arg10[%c0_29, %c0_30] : memref<8x128xbf16, #tpu.memory_space<vmem>>, vector<8x128xbf16>
    tpu.vector_store %arg10[%c0_29, %c0_30], %49 {strides = array<i32>} : memref<8x128xbf16, #tpu.memory_space<vmem>>, vector<8x128xbf16>,
    return
  }
  func.func @transform_0(%arg0: i32) -> (i32, i32) {
    %c0_i32 = arith.constant 0 : i32
    %c0_i32_0 = arith.constant 0 : i32
    return %arg0, %c0_i32 : i32, i32
  }
  func.func @transform_1(%arg0: i32) -> (i32, i32) {
    %c0_i32 = arith.constant 0 : i32
    %c0_i32_0 = arith.constant 0 : i32
    %c0_i32_1 = arith.constant 0 : i32
    return %c0_i32, %c0_i32_0 : i32, i32
  }
  func.func @transform_2(%arg0: i32) -> (i32, i32) {
    %c0_i32 = arith.constant 0 : i32
    %c0_i32_0 = arith.constant 0 : i32
    %c0_i32_1 = arith.constant 0 : i32
    return %c0_i32, %c0_i32_0 : i32, i32
  }
  func.func @transform_3(%arg0: i32) -> (i32, i32) {
    %c0_i32 = arith.constant 0 : i32
    %c0_i32_0 = arith.constant 0 : i32
    %c0_i32_1 = arith.constant 0 : i32
    return %c0_i32, %c0_i32_0 : i32, i32
  }
  func.func @transform_4(%arg0: i32) -> (i32, i32) {
    %c0_i32 = arith.constant 0 : i32
    %c0_i32_0 = arith.constant 0 : i32
    %c0_i32_1 = arith.constant 0 : i32
    return %c0_i32, %c0_i32_0 : i32, i32
  }
  func.func @transform_5(%arg0: i32) -> (i32, i32) {
    %c0_i32 = arith.constant 0 : i32
    %c0_i32_0 = arith.constant 0 : i32
    %c0_i32_1 = arith.constant 0 : i32
    return %c0_i32, %c0_i32_0 : i32, i32
  }
  func.func @transform_6(%arg0: i32) -> (i32, i32) {
    %c0_i32 = arith.constant 0 : i32
    %c0_i32_0 = arith.constant 0 : i32
    %c0_i32_1 = arith.constant 0 : i32
    return %c0_i32, %c0_i32_0 : i32, i32
  }
  func.func @transform_7(%arg0: i32) -> (i32, i32) {
    %c0_i32 = arith.constant 0 : i32
    %c0_i32_0 = arith.constant 0 : i32
    %c0_i32_1 = arith.constant 0 : i32
    return %c0_i32, %c0_i32_0 : i32, i32
  }
  func.func @transform_8(%arg0: i32) -> (i32, i32) {
    %c0_i32 = arith.constant 0 : i32
    %c0_i32_0 = arith.constant 0 : i32
    %c0_i32_1 = arith.constant 0 : i32
    return %c0_i32, %c0_i32_0 : i32, i32
  }
  func.func @transform_9(%arg0: i32) -> (i32, i32) {
    %c0_i32 = arith.constant 0 : i32
    %c0_i32_0 = arith.constant 0 : i32
    return %arg0, %c0_i32 : i32, i32
  }
}

</mosaic_0001>

<llo_original>
// kernel: tpu_custom_call.1
$region0: #{tpu_custom_call.1}
  #allocation0 [shape = 'u32[]', space=smem, size = 0x4, offset = 0x4, fixed_abs, tag = 'smem constant byte address 0x4 - core index']
  #allocation1 [shape = 'u32[72,128]{1,0:T(1,128)}', space=vmem, size = 0x9000, scoped, tag = 'internal scratch']
  %s0 = inlined_call_operand.hbm [shape: f32[8,16], index: 0, kind: input, shape index: {}]
  %s1 = inlined_call_operand.hbm [shape: bf16[16,128], index: 1, kind: input, shape index: {}]
  %s2 = inlined_call_operand.vmem [shape: f32[1,128], index: 2, kind: input, shape index: {}]
  %s3 = inlined_call_operand.hbm [shape: bf16[128,128], index: 3, kind: input, shape index: {}]
  %s4 = inlined_call_operand.vmem [shape: f32[1,128], index: 4, kind: input, shape index: {}]
  %s5 = inlined_call_operand.hbm [shape: bf16[128,128], index: 5, kind: input, shape index: {}]
  %s6 = inlined_call_operand.vmem [shape: f32[1,128], index: 6, kind: input, shape index: {}]
  %s7 = inlined_call_operand.hbm [shape: bf16[128,128], index: 7, kind: input, shape index: {}]
  %s8 = inlined_call_operand.vmem [shape: f32[1,128], index: 8, kind: input, shape index: {}]
  %s9 = inlined_call_operand.hbm [shape: bf16[8,128], index: 9, kind: output, shape index: {}]
  %s10 = sld [smem:[#allocation0]]
  $region66: #{tpu_custom_call.1} parent=0
    _
  %s12 = ssub.s32 1, %s10
  %s13 = scalar_select 0, %s12, %s10
  $region1: #{tpu_custom_call.1} parent=0
    #allocation2 [shape = 'u8[4096]{0}', space=vmem, size = 0x1000, scoped, tag = 'input window, operand 0, single buffered']
    #allocation3 [shape = 's32[1]{0}', space=sflag, size = 0x4, scoped, tag = 'scoped memory for tpu_custom_call.1']
    #allocation4 [shape = 's32[1]{0}', space=sflag, size = 0x4, scoped, tag = 'scoped memory for tpu_custom_call.1']
    #allocation5 [shape = 'u8[4096]{0}', space=vmem, size = 0x1000, scoped, tag = 'input window, operand 1, single buffered']
    #allocation6 [shape = 's32[1]{0}', space=sflag, size = 0x4, scoped, tag = 'scoped memory for tpu_custom_call.1']
    #allocation7 [shape = 'u8[32768]{0}', space=vmem, size = 0x8000, scoped, tag = 'input window, operand 3, single buffered']
    #allocation8 [shape = 'u8[32768]{0}', space=vmem, size = 0x8000, scoped, tag = 'input window, operand 5, single buffered']
    #allocation9 [shape = 's32[1]{0}', space=sflag, size = 0x4, scoped, tag = 'scoped memory for tpu_custom_call.1']
    #allocation10 [shape = 'u8[32768]{0}', space=vmem, size = 0x8000, scoped, tag = 'input window, operand 7, single buffered']
    #allocation11 [shape = 'u8[2048]{0}', space=vmem, size = 0x800, scoped, tag = 'output window, operand 0, single buffered']
    %14 = vsyncpa [#allocation3], 0
    %15 = vsyncpa [#allocation6], 0
    %16 = vsyncpa [#allocation9], 0
    %17 = vsyncpa [#allocation4], 0
    // Predicated region
    $region2: #{tpu_custom_call.1} parent=1 // pred_check
      _
    $region3: #{tpu_custom_call.1} parent=1 // pred_check_branch
      %19 = sbr.rel (0) target = $region5
    $region4: #{tpu_custom_call.1} parent=1 // pred_region
      %21 = vsyncadd [#allocation3], 0
      %s23 = sshll.u32 %s0, 4
      %s24 = int_to_ptr.hbm [resolvable:$true] %s23
      %s25 = sshll.u32 [#allocation2], 4
      %s26 = int_to_ptr.vmem [resolvable:$true] %s25
      %28 = dma.hbm_to_vmem [thread:$0]  %s24, 128, %s26, [#allocation3]
    $region5: #{tpu_custom_call.1} parent=1 // pred_fallthru
      _
    // Predicated region
    $region6: #{tpu_custom_call.1} parent=1 // pred_check
      _
    $region7: #{tpu_custom_call.1} parent=1 // pred_check_branch
      %30 = sbr.rel (0) target = $region9
    $region8: #{tpu_custom_call.1} parent=1 // pred_region
      %32 = vsyncadd [#allocation6], 0
      %s33 = sshll.u32 %s1, 4
      %s34 = int_to_ptr.hbm [resolvable:$true] %s33
      %s35 = sshll.u32 [#allocation5], 4
      %s36 = int_to_ptr.vmem [resolvable:$true] %s35
      %41 = dma.hbm_to_vmem [thread:$0]  %s34, 128, %s36, [#allocation6], 64, 64, 4
    $region9: #{tpu_custom_call.1} parent=1 // pred_fallthru
      _
    // Predicated region
    $region10: #{tpu_custom_call.1} parent=1 // pred_check
      _
    $region11: #{tpu_custom_call.1} parent=1 // pred_check_branch
      %43 = sbr.rel (0) target = $region13
    $region12: #{tpu_custom_call.1} parent=1 // pred_region
      _
    $region13: #{tpu_custom_call.1} parent=1 // pred_fallthru
      _
    // Predicated region
    $region14: #{tpu_custom_call.1} parent=1 // pred_check
      _
    $region15: #{tpu_custom_call.1} parent=1 // pred_check_branch
      %45 = sbr.rel (0) target = $region17
    $region16: #{tpu_custom_call.1} parent=1 // pred_region
      %47 = vsyncadd [#allocation6], 0
      %s48 = sshll.u32 %s3, 4
      %s49 = int_to_ptr.hbm [resolvable:$true] %s48
      %s50 = sshll.u32 [#allocation7], 4
      %s51 = int_to_ptr.vmem [resolvable:$true] %s50
      %56 = dma.hbm_to_vmem [thread:$0]  %s49, 1024, %s51, [#allocation6], 64, 64, 4
    $region17: #{tpu_custom_call.1} parent=1 // pred_fallthru
      _
    // Predicated region
    $region18: #{tpu_custom_call.1} parent=1 // pred_check
      _
    $region19: #{tpu_custom_call.1} parent=1 // pred_check_branch
      %58 = sbr.rel (0) target = $region21
    $region20: #{tpu_custom_call.1} parent=1 // pred_region
      _
    $region21: #{tpu_custom_call.1} parent=1 // pred_fallthru
      _
    // Predicated region
    $region22: #{tpu_custom_call.1} parent=1 // pred_check
      _
    $region23: #{tpu_custom_call.1} parent=1 // pred_check_branch
      %60 = sbr.rel (0) target = $region25
    $region24: #{tpu_custom_call.1} parent=1 // pred_region
      %62 = vsyncadd [#allocation9], 0
      %s63 = sshll.u32 %s5, 4
      %s64 = int_to_ptr.hbm [resolvable:$true] %s63
      %s65 = sshll.u32 [#allocation8], 4
      %s66 = int_to_ptr.vmem [resolvable:$true] %s65
      %71 = dma.hbm_to_vmem [thread:$0]  %s64, 1024, %s66, [#allocation9], 64, 64, 4
    $region25: #{tpu_custom_call.1} parent=1 // pred_fallthru
      _
    // Predicated region
    $region26: #{tpu_custom_call.1} parent=1 // pred_check
      _
    $region27: #{tpu_custom_call.1} parent=1 // pred_check_branch
      %73 = sbr.rel (0) target = $region29
    $region28: #{tpu_custom_call.1} parent=1 // pred_region
      _
    $region29: #{tpu_custom_call.1} parent=1 // pred_fallthru
      _
    // Predicated region
    $region30: #{tpu_custom_call.1} parent=1 // pred_check
      _
    $region31: #{tpu_custom_call.1} parent=1 // pred_check_branch
      %75 = sbr.rel (0) target = $region33
    $region32: #{tpu_custom_call.1} parent=1 // pred_region
      %77 = vsyncadd [#allocation9], 0
      %s78 = sshll.u32 %s7, 4
      %s79 = int_to_ptr.hbm [resolvable:$true] %s78
      %s80 = sshll.u32 [#allocation10], 4
      %s81 = int_to_ptr.vmem [resolvable:$true] %s80
      %86 = dma.hbm_to_vmem [thread:$0]  %s79, 1024, %s81, [#allocation9], 64, 64, 4
    $region33: #{tpu_custom_call.1} parent=1 // pred_fallthru
      _
    // Predicated region
    $region34: #{tpu_custom_call.1} parent=1 // pred_check
      _
    $region35: #{tpu_custom_call.1} parent=1 // pred_check_branch
      %88 = sbr.rel (0) target = $region37
    $region36: #{tpu_custom_call.1} parent=1 // pred_region
      _
    $region37: #{tpu_custom_call.1} parent=1 // pred_fallthru
      _
    // Predicated region
    $region38: #{tpu_custom_call.1} parent=1 // pred_check
      _
    $region39: #{tpu_custom_call.1} parent=1 // pred_check_branch
      %90 = sbr.rel (0) target = $region41
    $region40: #{tpu_custom_call.1} parent=1 // pred_region
      %92 = dma.done [#allocation3], 128
    $region41: #{tpu_custom_call.1} parent=1 // pred_fallthru
      _
    // Predicated region
    $region42: #{tpu_custom_call.1} parent=1 // pred_check
      _
    $region43: #{tpu_custom_call.1} parent=1 // pred_check_branch
      %94 = sbr.rel (0) target = $region45
    $region44: #{tpu_custom_call.1} parent=1 // pred_region
      %96 = dma.done [#allocation6], 128
    $region45: #{tpu_custom_call.1} parent=1 // pred_fallthru
      _
    // Predicated region
    $region46: #{tpu_custom_call.1} parent=1 // pred_check
      _
    $region47: #{tpu_custom_call.1} parent=1 // pred_check_branch
      %98 = sbr.rel (0) target = $region49
    $region48: #{tpu_custom_call.1} parent=1 // pred_region
      %100 = dma.done [#allocation6], 1024
    $region49: #{tpu_custom_call.1} parent=1 // pred_fallthru
      _
    // Predicated region
    $region50: #{tpu_custom_call.1} parent=1 // pred_check
      _
    $region51: #{tpu_custom_call.1} parent=1 // pred_check_branch
      %102 = sbr.rel (0) target = $region53
    $region52: #{tpu_custom_call.1} parent=1 // pred_region
      %104 = dma.done [#allocation9], 1024
    $region53: #{tpu_custom_call.1} parent=1 // pred_fallthru
      _
    // Predicated region
    $region54: #{tpu_custom_call.1} parent=1 // pred_check
      _
    $region55: #{tpu_custom_call.1} parent=1 // pred_check_branch
      %106 = sbr.rel (0) target = $region57
    $region56: #{tpu_custom_call.1} parent=1 // pred_region
      %108 = dma.done [#allocation9], 1024
    $region57: #{tpu_custom_call.1} parent=1 // pred_fallthru
      _
    %v110 = vld [vmem:[#allocation2] sm:$0xff]
    %v111 = vpack.c.bf16 %v110, %v110
    %v112 = vld [vmem:[#allocation5] sm:$0xf]
    %v113 = vld [vmem:[#allocation5 + $0x4] sm:$0xf]
    %v114 = vld [vmem:[%s2] sm:$0x1]
    %v116 = vperm.slane %v114, 0
    %v120 = vunpack.c.l.b16 %v112
    %v121 = vunpack.c.l.b16 %v113
    %v122 = vpack.c.b16 %v121, %v120
    %vm124 = vcmask 130048
    %v126 = vsel %vm124, %v111, 0
    %128 = vmatpush.bf16.msra.mxu0 0
    %129 = vmatpush.bf16.msra.mxu0 0
    %130 = vmatpush.bf16.msra.mxu0 0
    %131 = vmatpush.bf16.msra.mxu0 0
    %132 = vmatpush.bf16.msra.mxu0 0
    %133 = vmatpush.bf16.msra.mxu0 0
    %134 = vmatpush.bf16.msra.mxu0 0
    %135 = vmatpush.bf16.msra.mxu0 %v122
    %136 = vmatmul.bf16.gmra.mxu0 %v126
    %v137 = vpop.f32.mrf.mxu0
    %v138 = vadd.f32 %v116, %v137
    %v139 = vpop.f32.mrf.mxu0
    %140 = vdwg.mxu0
    %v141 = vmax.f32 %v138, 0.0
    %v142 = vpack.c.bf16 %v141, %v141
    %v143 = vld [vmem:[#allocation7] sm:$0xf]
    %v144 = vld [vmem:[#allocation7 + $0x4] sm:$0xf]
    %v145 = vld [vmem:[#allocation7 + $0x8] sm:$0xf]
    %v146 = vld [vmem:[#allocation7 + $0xc] sm:$0xf]
    %v147 = vld [vmem:[#allocation7 + $0x10] sm:$0xf]
    %v148 = vld [vmem:[#allocation7 + $0x14] sm:$0xf]
    %v149 = vld [vmem:[#allocation7 + $0x18] sm:$0xf]
    %v150 = vld [vmem:[#allocation7 + $0x1c] sm:$0xf]
    %v151 = vld [vmem:[#allocation7 + $0x20] sm:$0xf]
    %v152 = vld [vmem:[#allocation7 + $0x24] sm:$0xf]
    %v153 = vld [vmem:[#allocation7 + $0x28] sm:$0xf]
    %v154 = vld [vmem:[#allocation7 + $0x2c] sm:$0xf]
    %v155 = vld [vmem:[#allocation7 + $0x30] sm:$0xf]
    %v156 = vld [vmem:[#allocation7 + $0x34] sm:$0xf]
    %v157 = vld [vmem:[#allocation7 + $0x38] sm:$0xf]
    %v158 = vld [vmem:[#allocation7 + $0x3c] sm:$0xf]
    %v159 = vld [vmem:[%s4] sm:$0x1]
    %v161 = vperm.slane %v159, 0
    %v179 = vunpack.c.l.b16 %v143
    %v180 = vunpack.c.l.b16 %v144
    %v181 = vunpack.c.l.b16 %v145
    %v182 = vunpack.c.l.b16 %v146
    %v183 = vunpack.c.l.b16 %v147
    %v184 = vunpack.c.l.b16 %v148
    %v185 = vunpack.c.l.b16 %v149
    %v186 = vunpack.c.l.b16 %v150
    %v187 = vunpack.c.l.b16 %v151
    %v188 = vunpack.c.l.b16 %v152
    %v189 = vunpack.c.l.b16 %v153
    %v190 = vunpack.c.l.b16 %v154
    %v191 = vunpack.c.l.b16 %v155
    %v192 = vunpack.c.l.b16 %v156
    %v193 = vunpack.c.l.b16 %v157
    %v194 = vunpack.c.l.b16 %v158
    %v195 = vpack.c.b16 %v180, %v179
    %v196 = vpack.c.b16 %v182, %v181
    %v197 = vpack.c.b16 %v184, %v183
    %v198 = vpack.c.b16 %v186, %v185
    %v199 = vpack.c.b16 %v188, %v187
    %v200 = vpack.c.b16 %v190, %v189
    %v201 = vpack.c.b16 %v192, %v191
    %v202 = vpack.c.b16 %v194, %v193
    %211 = vmatpush.bf16.msra.mxu0 %v202
    %212 = vmatpush.bf16.msra.mxu0 %v201
    %213 = vmatpush.bf16.msra.mxu0 %v200
    %214 = vmatpush.bf16.msra.mxu0 %v199
    %215 = vmatpush.bf16.msra.mxu0 %v198
    %216 = vmatpush.bf16.msra.mxu0 %v197
    %217 = vmatpush.bf16.msra.mxu0 %v196
    %218 = vmatpush.bf16.msra.mxu0 %v195
    %219 = vmatmul.bf16.gmra.mxu0 %v142
    %v220 = vpop.f32.mrf.mxu0
    %v221 = vadd.f32 %v161, %v220
    %v222 = vpop.f32.mrf.mxu0
    %223 = vdwg.mxu0
    %v224 = vmax.f32 %v221, 0.0
    %v225 = vpack.c.bf16 %v224, %v224
    %v226 = vld [vmem:[#allocation8] sm:$0xf]
    %v227 = vld [vmem:[#allocation8 + $0x4] sm:$0xf]
    %v228 = vld [vmem:[#allocation8 + $0x8] sm:$0xf]
    %v229 = vld [vmem:[#allocation8 + $0xc] sm:$0xf]
    %v230 = vld [vmem:[#allocation8 + $0x10] sm:$0xf]
    %v231 = vld [vmem:[#allocation8 + $0x14] sm:$0xf]
    %v232 = vld [vmem:[#allocation8 + $0x18] sm:$0xf]
    %v233 = vld [vmem:[#allocation8 + $0x1c] sm:$0xf]
    %v234 = vld [vmem:[#allocation8 + $0x20] sm:$0xf]
    %v235 = vld [vmem:[#allocation8 + $0x24] sm:$0xf]
    %v236 = vld [vmem:[#allocation8 + $0x28] sm:$0xf]
    %v237 = vld [vmem:[#allocation8 + $0x2c] sm:$0xf]
    %v238 = vld [vmem:[#allocation8 + $0x30] sm:$0xf]
    %v239 = vld [vmem:[#allocation8 + $0x34] sm:$0xf]
    %v240 = vld [vmem:[#allocation8 + $0x38] sm:$0xf]
    %v241 = vld [vmem:[#allocation8 + $0x3c] sm:$0xf]
    %v242 = vld [vmem:[%s6] sm:$0x1]
    %v244 = vperm.slane %v242, 0
    %v262 = vunpack.c.l.b16 %v226
    %v263 = vunpack.c.l.b16 %v227
    %v264 = vunpack.c.l.b16 %v228
    %v265 = vunpack.c.l.b16 %v229
    %v266 = vunpack.c.l.b16 %v230
    %v267 = vunpack.c.l.b16 %v231
    %v268 = vunpack.c.l.b16 %v232
    %v269 = vunpack.c.l.b16 %v233
    %v270 = vunpack.c.l.b16 %v234
    %v271 = vunpack.c.l.b16 %v235
    %v272 = vunpack.c.l.b16 %v236
    %v273 = vunpack.c.l.b16 %v237
    %v274 = vunpack.c.l.b16 %v238
    %v275 = vunpack.c.l.b16 %v239
    %v276 = vunpack.c.l.b16 %v240
    %v277 = vunpack.c.l.b16 %v241
    %v278 = vpack.c.b16 %v263, %v262
    %v279 = vpack.c.b16 %v265, %v264
    %v280 = vpack.c.b16 %v267, %v266
    %v281 = vpack.c.b16 %v269, %v268
    %v282 = vpack.c.b16 %v271, %v270
    %v283 = vpack.c.b16 %v273, %v272
    %v284 = vpack.c.b16 %v275, %v274
    %v285 = vpack.c.b16 %v277, %v276
    %294 = vmatpush.bf16.msra.mxu0 %v285
    %295 = vmatpush.bf16.msra.mxu0 %v284
    %296 = vmatpush.bf16.msra.mxu0 %v283
    %297 = vmatpush.bf16.msra.mxu0 %v282
    %298 = vmatpush.bf16.msra.mxu0 %v281
    %299 = vmatpush.bf16.msra.mxu0 %v280
    %300 = vmatpush.bf16.msra.mxu0 %v279
    %301 = vmatpush.bf16.msra.mxu0 %v278
    %302 = vmatmul.bf16.gmra.mxu0 %v225
    %v303 = vpop.f32.mrf.mxu0
    %v304 = vadd.f32 %v244, %v303
    %v305 = vpop.f32.mrf.mxu0
    %306 = vdwg.mxu0
    %v307 = vmax.f32 %v304, 0.0
    %v308 = vpack.c.bf16 %v307, %v307
    %v309 = vld [vmem:[#allocation10] sm:$0xf]
    %v310 = vld [vmem:[#allocation10 + $0x4] sm:$0xf]
    %v311 = vld [vmem:[#allocation10 + $0x8] sm:$0xf]
    %v312 = vld [vmem:[#allocation10 + $0xc] sm:$0xf]
    %v313 = vld [vmem:[#allocation10 + $0x10] sm:$0xf]
    %v314 = vld [vmem:[#allocation10 + $0x14] sm:$0xf]
    %v315 = vld [vmem:[#allocation10 + $0x18] sm:$0xf]
    %v316 = vld [vmem:[#allocation10 + $0x1c] sm:$0xf]
    %v317 = vld [vmem:[#allocation10 + $0x20] sm:$0xf]
    %v318 = vld [vmem:[#allocation10 + $0x24] sm:$0xf]
    %v319 = vld [vmem:[#allocation10 + $0x28] sm:$0xf]
    %v320 = vld [vmem:[#allocation10 + $0x2c] sm:$0xf]
    %v321 = vld [vmem:[#allocation10 + $0x30] sm:$0xf]
    %v322 = vld [vmem:[#allocation10 + $0x34] sm:$0xf]
    %v323 = vld [vmem:[#allocation10 + $0x38] sm:$0xf]
    %v324 = vld [vmem:[#allocation10 + $0x3c] sm:$0xf]
    %v325 = vld [vmem:[%s8] sm:$0x1]
    %v327 = vperm.slane %v325, 0
    %v345 = vunpack.c.l.b16 %v309
    %v346 = vunpack.c.l.b16 %v310
    %v347 = vunpack.c.l.b16 %v311
    %v348 = vunpack.c.l.b16 %v312
    %v349 = vunpack.c.l.b16 %v313
    %v350 = vunpack.c.l.b16 %v314
    %v351 = vunpack.c.l.b16 %v315
    %v352 = vunpack.c.l.b16 %v316
    %v353 = vunpack.c.l.b16 %v317
    %v354 = vunpack.c.l.b16 %v318
    %v355 = vunpack.c.l.b16 %v319
    %v356 = vunpack.c.l.b16 %v320
    %v357 = vunpack.c.l.b16 %v321
    %v358 = vunpack.c.l.b16 %v322
    %v359 = vunpack.c.l.b16 %v323
    %v360 = vunpack.c.l.b16 %v324
    %v361 = vpack.c.b16 %v346, %v345
    %v362 = vpack.c.b16 %v348, %v347
    %v363 = vpack.c.b16 %v350, %v349
    %v364 = vpack.c.b16 %v352, %v351
    %v365 = vpack.c.b16 %v354, %v353
    %v366 = vpack.c.b16 %v356, %v355
    %v367 = vpack.c.b16 %v358, %v357
    %v368 = vpack.c.b16 %v360, %v359
    %377 = vmatpush.bf16.msra.mxu0 %v368
    %378 = vmatpush.bf16.msra.mxu0 %v367
    %379 = vmatpush.bf16.msra.mxu0 %v366
    %380 = vmatpush.bf16.msra.mxu0 %v365
    %381 = vmatpush.bf16.msra.mxu0 %v364
    %382 = vmatpush.bf16.msra.mxu0 %v363
    %383 = vmatpush.bf16.msra.mxu0 %v362
    %384 = vmatpush.bf16.msra.mxu0 %v361
    %385 = vmatmul.bf16.gmra.mxu0 %v308
    %v386 = vpop.f32.mrf.mxu0
    %v387 = vadd.f32 %v327, %v386
    %v388 = vpop.f32.mrf.mxu0
    %389 = vdwg.mxu0
    %v390 = vlaneseq
    %v391 = vand.u32 %v390, 127
    %vm392 = vcmp.lt.s32.totalorder %v391, 4
    %v393 = vsel %vm392, %v387, 0.0
    %394 = vadd.xlane.f32.xlu0 %v393
    %v395 = vpop.xlane.xlu0 %394
    %vm396 = vcmp.eq.s32.totalorder %v391, 4
    %v397 = vsel %vm396, %v387, 0.0
    %398 = vadd.xlane.f32.xlu0 %v397
    %v399 = vpop.xlane.xlu0 %398
    %v400 = vmul.f32 %v395, 0.25
    %v401 = vsub.f32 %v399, %v400
    %v402 = vadd.f32 %v387, %v401
    %v403 = vpack.c.bf16 %v402, %v402
    %404 = vst [vmem:[#allocation11] sm:$0xf] %v403
    // Predicated region
    $region58: #{tpu_custom_call.1} parent=1 // pred_check
      _
    $region59: #{tpu_custom_call.1} parent=1 // pred_check_branch
      %406 = sbr.rel (0) target = $region61
    $region60: #{tpu_custom_call.1} parent=1 // pred_region
      %408 = vsyncadd [#allocation4], 0
      %s410 = sshll.u32 [#allocation11], 4
      %s411 = int_to_ptr.vmem [resolvable:$true] %s410
      %s412 = sshll.u32 %s9, 4
      %s413 = int_to_ptr.hbm [resolvable:$true] %s412
      %415 = dma.vmem_to_hbm [thread:$0]  %s411, 64, %s413, [#allocation4]
    $region61: #{tpu_custom_call.1} parent=1 // pred_fallthru
      _
    // Predicated region
    $region62: #{tpu_custom_call.1} parent=1 // pred_check
      _
    $region63: #{tpu_custom_call.1} parent=1 // pred_check_branch
      %417 = sbr.rel (0) target = $region65
    $region64: #{tpu_custom_call.1} parent=1 // pred_region
      %419 = dma.done [#allocation4], 64
    $region65: #{tpu_custom_call.1} parent=1 // pred_fallthru
      _
    %420 = vsyncpa [#allocation3], 1
    %421 = vsyncpa [#allocation6], 1
    %422 = vsyncpa [#allocation9], 1
    %423 = vsyncpa [#allocation4], 1

</llo_original>
